<compile_context>
chip_gen: v6e
topology: v6e:2x2x1
jax: 0.10.0
libtpu: 0.0.40
codegen_flags: <defaults>
</compile_context>

<pallas_src>
from functools import partial

import jax
import jax.numpy as jnp
from jax.experimental import pallas as pl
from jax.experimental.pallas import tpu as pltpu

LANE = 128
BATCH_ALIGN = 16          # covers f32 (8) and bf16 (16) sublane packing


def _round_up(n, m):
    return m * pl.cdiv(n, m)


def _pad2d(a, rows, cols):
    r, c = a.shape
    return jnp.pad(a, ((0, rows - r), (0, cols - c)))


def dqn_kernel(x_ref, w1_ref, b1_ref, w2_ref, b2_ref,
               w3_ref, b3_ref, w4_ref, b4_ref, o_ref):
    # One batch tile of x; all weights/biases are VMEM-resident for the whole grid
    # (constant index_maps), biases stay f32, matmuls accumulate in f32.
    x = x_ref[...]
    h = jnp.maximum(
        jnp.dot(x, w1_ref[...], preferred_element_type=jnp.float32) + b1_ref[...], 0.0)
    h = h.astype(w2_ref.dtype)   # no-op in f32; keeps MXU operands bf16 if requested
    h = jnp.maximum(
        jnp.dot(h, w2_ref[...], preferred_element_type=jnp.float32) + b2_ref[...], 0.0)
    h = h.astype(w3_ref.dtype)
    h = jnp.maximum(
        jnp.dot(h, w3_ref[...], preferred_element_type=jnp.float32) + b3_ref[...], 0.0)
    h = h.astype(w4_ref.dtype)
    out = jnp.dot(h, w4_ref[...], preferred_element_type=jnp.float32) + b4_ref[...]
    o_ref[...] = out.astype(o_ref.dtype)


def prepare_params(params, *, compute_dtype=jnp.float32):
    """One-time weight preparation (pad W4/b4 columns to a sublane multiple, cast
    MXU operands to compute_dtype). Call once; reuse across forward calls."""
    (w1, b1), (w2, b2), (w3, b3), (w4, b4) = params
    n_actions = w4.shape[1]
    n_out = _round_up(n_actions, 8)               # 3 -> 8 zero-padded Q columns
    cd = compute_dtype
    w4p = _pad2d(w4, w4.shape[0], n_out).astype(cd)
    b4p = _pad2d(b4, 1, n_out)                    # biases stay f32
    return (w1.astype(cd), b1, w2.astype(cd), b2, w3.astype(cd), b3, w4p, b4p)


def _choose_tiling(B, tm_max, min_tiles):
    """Pick a batch tile size: big tiles (amortize ~0.35 us/step pipeline overhead),
    >= min_tiles tiles when possible (v7x: 2 TensorCores), bounded padding."""
    bp = _round_up(B, BATCH_ALIGN)
    if bp <= BATCH_ALIGN * min_tiles:             # tiny batch: single tile
        return bp, bp
    n_tiles = max(min_tiles, pl.cdiv(bp, tm_max))
    tm = _round_up(pl.cdiv(bp, n_tiles), BATCH_ALIGN)
    b_pad = tm * pl.cdiv(bp, tm)
    return tm, b_pad


@partial(jax.jit, static_argnames=("n_actions", "tm_max", "min_tiles"))
def dqn_forward(x, prepared_weights, *, n_actions, tm_max=1024, min_tiles=2):
    """Fused DQN forward. `prepared_weights` comes from prepare_params().
    Returns [B, n_actions] float32."""
    w1, b1, w2, b2, w3, b3, w4, b4 = prepared_weights
    B, n_obs = x.shape
    h1, h2, h3 = w1.shape[1], w2.shape[1], w3.shape[1]   # 128, 256, 128
    n_out = w4.shape[1]                                   # padded n_actions (8)
    cd = w1.dtype

    tm, b_pad = _choose_tiling(B, tm_max, min_tiles)
    xp = x if b_pad == B else jnp.pad(x, ((0, b_pad - B), (0, 0)))
    xp = xp.astype(cd)

    const = lambda i: (0, 0)
    out_padded = pl.pallas_call(
        dqn_kernel,
        out_shape=jax.ShapeDtypeStruct((b_pad, n_out), jnp.float32),
        grid_spec=pltpu.PrefetchScalarGridSpec(
            num_scalar_prefetch=0,
            grid=(b_pad // tm,),
            in_specs=[
                pl.BlockSpec((tm, n_obs), lambda i: (i, 0)),   # x: tiled over batch
                pl.BlockSpec((n_obs, h1), const),              # weights: VMEM-resident
                pl.BlockSpec((1, h1), const),
                pl.BlockSpec((h1, h2), const),
                pl.BlockSpec((1, h2), const),
                pl.BlockSpec((h2, h3), const),
                pl.BlockSpec((1, h3), const),
                pl.BlockSpec((h3, n_out), const),
                pl.BlockSpec((1, n_out), const),
            ],
            out_specs=pl.BlockSpec((tm, n_out), lambda i: (i, 0)),
        ),
        compiler_params=pltpu.CompilerParams(
            dimension_semantics=("parallel",)),   # shard batch tiles across v7x's 2 TCs
    )(xp, w1, b1, w2, b2, w3, b3, w4, b4)

    return out_padded[:B, :n_actions]


def init_linear(key, fan_in, fan_out):
    # PyTorch nn.Linear default init: U(-1/sqrt(fan_in), 1/sqrt(fan_in)) for W and b.
    kw, kb = jax.random.split(key)
    bound = 1.0 / (fan_in ** 0.5)
    w = jax.random.uniform(kw, (fan_in, fan_out), jnp.float32, -bound, bound)
    b = jax.random.uniform(kb, (1, fan_out), jnp.float32, -bound, bound)
    return w, b


def make_params(key, n_observations, n_actions):
    k1, k2, k3, k4 = jax.random.split(key, 4)
    return (
        init_linear(k1, n_observations, 128),
        init_linear(k2, 128, 256),
        init_linear(k3, 256, 128),
        init_linear(k4, 128, n_actions),
    )


def dqn_reference(x, params):
    h = x
    for i, (w, b) in enumerate(params):
        h = h @ w + b
        if i < len(params) - 1:
            h = jnp.maximum(h, 0.0)
    return h


if __name__ == "__main__":
    key = jax.random.PRNGKey(0)
    k_params, k_x = jax.random.split(key)

    batch = 2
    n_observations = 32   # env observation size (synthetic)
    n_actions = 3         # e.g. positions {-1, 0, 1}

    params = make_params(k_params, n_observations, n_actions)
    x = jax.random.normal(k_x, (batch, n_observations), jnp.float32)

    # f32 path: bit-compatible with the reference (small-batch RL inference case).
    prep_f32 = prepare_params(params, compute_dtype=jnp.float32)
    out = jax.block_until_ready(dqn_forward(x, prep_f32, n_actions=n_actions))
    ref = dqn_reference(x, params)
    assert out.shape == (batch, n_actions)
    assert jnp.allclose(out, ref, atol=1e-4, rtol=1e-4), "mismatch vs reference"

    # Larger batch: exercises multi-tile grid (>=2 tiles -> both v7x TensorCores).
    big_B = 1000
    xb = jax.random.normal(jax.random.PRNGKey(1), (big_B, n_observations), jnp.float32)
    out_big = jax.block_until_ready(dqn_forward(xb, prep_f32, n_actions=n_actions))
    ref_big = dqn_reference(xb, params)
    assert out_big.shape == (big_B, n_actions)
    assert jnp.allclose(out_big, ref_big, atol=1e-4, rtol=1e-4), "mismatch (batched)"

    # bf16 MXU operands with f32 accumulation: recommended large-batch config on
    # v5e/v6e/v7x (bf16-native MXUs); checked at a loose tolerance vs the f32 ref.
    prep_bf16 = prepare_params(params, compute_dtype=jnp.bfloat16)
    out_bf16 = jax.block_until_ready(dqn_forward(xb, prep_bf16, n_actions=n_actions))
    assert out_bf16.shape == (big_B, n_actions)
    assert jnp.allclose(out_bf16, ref_big, atol=1e-1, rtol=1e-1), "mismatch (bf16)"

    print("KERNEL_OK")
</pallas_src>

<mosaic_0001>
module attributes {stable_mosaic.version = 11 : i64} {
  func.func @dqn_kernel(%arg0: i32, %arg1: memref<16x32xf32, #tpu.memory_space<vmem>>, %arg2: memref<32x128xf32, #tpu.memory_space<vmem>>, %arg3: memref<1x128xf32, #tpu.memory_space<vmem>>, %arg4: memref<128x256xf32, #tpu.memory_space<vmem>>, %arg5: memref<1x256xf32, #tpu.memory_space<vmem>>, %arg6: memref<256x128xf32, #tpu.memory_space<vmem>>, %arg7: memref<1x128xf32, #tpu.memory_space<vmem>>, %arg8: memref<128x8xf32, #tpu.memory_space<vmem>>, %arg9: memref<1x8xf32, #tpu.memory_space<vmem>>, %arg10: memref<16x8xf32, #tpu.memory_space<vmem>>) attributes {dimension_semantics = [#tpu.dimension_semantics<parallel>], iteration_bounds = array<i64: 1>, scalar_prefetch = 0 : i64, scratch_operands = 0 : i64, tpu.core_type = #tpu.core_type<tc>, window_params = [{transform_indices = @transform_0, window_bounds = array<i64: 16, 32>}, {pipeline_mode = #tpu.pipeline_mode<synchronous>, transform_indices = @transform_1, window_bounds = array<i64: 32, 128>}, {pipeline_mode = #tpu.pipeline_mode<synchronous>, transform_indices = @transform_2, window_bounds = array<i64: 1, 128>}, {pipeline_mode = #tpu.pipeline_mode<synchronous>, transform_indices = @transform_3, window_bounds = array<i64: 128, 256>}, {pipeline_mode = #tpu.pipeline_mode<synchronous>, transform_indices = @transform_4, window_bounds = array<i64: 1, 256>}, {pipeline_mode = #tpu.pipeline_mode<synchronous>, transform_indices = @transform_5, window_bounds = array<i64: 256, 128>}, {pipeline_mode = #tpu.pipeline_mode<synchronous>, transform_indices = @transform_6, window_bounds = array<i64: 1, 128>}, {pipeline_mode = #tpu.pipeline_mode<synchronous>, transform_indices = @transform_7, window_bounds = array<i64: 128, 8>}, {pipeline_mode = #tpu.pipeline_mode<synchronous>, transform_indices = @transform_8, window_bounds = array<i64: 1, 8>}, {transform_indices = @transform_9, window_bounds = array<i64: 16, 8>}]} {
    %c0 = arith.constant 0 : index
    %c0_0 = arith.constant 0 : index
    %0 = vector.load %arg1[%c0, %c0_0] : memref<16x32xf32, #tpu.memory_space<vmem>>, vector<16x32xf32>
    %c0_1 = arith.constant 0 : index
    %c0_2 = arith.constant 0 : index
    %1 = vector.load %arg2[%c0_1, %c0_2] : memref<32x128xf32, #tpu.memory_space<vmem>>, vector<32x128xf32>
    %cst = arith.constant dense<0.000000e+00> : vector<16x128xf32>
    %2 = tpu.matmul %0, %1, %cst {dimension_numbers = #tpu.dot_dimension_numbers<[1], [0], [0], [1], [0, 0, 1, 1], [], []>} : vector<16x32xf32>, vector<32x128xf32>, vector<16x128xf32> -> vector<16x128xf32>
    %c0_3 = arith.constant 0 : index
    %c0_4 = arith.constant 0 : index
    %3 = vector.load %arg3[%c0_3, %c0_4] : memref<1x128xf32, #tpu.memory_space<vmem>>, vector<1x128xf32>
    %4 = vector.broadcast %3 : vector<1x128xf32> to vector<16x128xf32>
    %5 = arith.addf %2, %4 : vector<16x128xf32>
    %cst_5 = arith.constant 0.000000e+00 : f32
    %6 = vector.broadcast %cst_5 : f32 to vector<16x128xf32>
    %7 = arith.maximumf %5, %6 : vector<16x128xf32>
    %c0_6 = arith.constant 0 : index
    %c0_7 = arith.constant 0 : index
    %8 = vector.load %arg4[%c0_6, %c0_7] : memref<128x256xf32, #tpu.memory_space<vmem>>, vector<128x256xf32>
    %cst_8 = arith.constant dense<0.000000e+00> : vector<16x256xf32>
    %9 = tpu.matmul %7, %8, %cst_8 {dimension_numbers = #tpu.dot_dimension_numbers<[1], [0], [0], [1], [0, 0, 1, 1], [], []>} : vector<16x128xf32>, vector<128x256xf32>, vector<16x256xf32> -> vector<16x256xf32>
    %c0_9 = arith.constant 0 : index
    %c0_10 = arith.constant 0 : index
    %10 = vector.load %arg5[%c0_9, %c0_10] : memref<1x256xf32, #tpu.memory_space<vmem>>, vector<1x256xf32>
    %11 = vector.broadcast %10 : vector<1x256xf32> to vector<16x256xf32>
    %12 = arith.addf %9, %11 : vector<16x256xf32>
    %cst_11 = arith.constant 0.000000e+00 : f32
    %13 = vector.broadcast %cst_11 : f32 to vector<16x256xf32>
    %14 = arith.maximumf %12, %13 : vector<16x256xf32>
    %c0_12 = arith.constant 0 : index
    %c0_13 = arith.constant 0 : index
    %15 = vector.load %arg6[%c0_12, %c0_13] : memref<256x128xf32, #tpu.memory_space<vmem>>, vector<256x128xf32>
    %cst_14 = arith.constant dense<0.000000e+00> : vector<16x128xf32>
    %16 = tpu.matmul %14, %15, %cst_14 {dimension_numbers = #tpu.dot_dimension_numbers<[1], [0], [0], [1], [0, 0, 1, 1], [], []>} : vector<16x256xf32>, vector<256x128xf32>, vector<16x128xf32> -> vector<16x128xf32>
    %c0_15 = arith.constant 0 : index
    %c0_16 = arith.constant 0 : index
    %17 = vector.load %arg7[%c0_15, %c0_16] : memref<1x128xf32, #tpu.memory_space<vmem>>, vector<1x128xf32>
    %18 = vector.broadcast %17 : vector<1x128xf32> to vector<16x128xf32>
    %19 = arith.addf %16, %18 : vector<16x128xf32>
    %cst_17 = arith.constant 0.000000e+00 : f32
    %20 = vector.broadcast %cst_17 : f32 to vector<16x128xf32>
    %21 = arith.maximumf %19, %20 : vector<16x128xf32>
    %c0_18 = arith.constant 0 : index
    %c0_19 = arith.constant 0 : index
    %22 = vector.load %arg8[%c0_18, %c0_19] : memref<128x8xf32, #tpu.memory_space<vmem>>, vector<128x8xf32>
    %cst_20 = arith.constant dense<0.000000e+00> : vector<16x8xf32>
    %23 = tpu.matmul %21, %22, %cst_20 {dimension_numbers = #tpu.dot_dimension_numbers<[1], [0], [0], [1], [0, 0, 1, 1], [], []>} : vector<16x128xf32>, vector<128x8xf32>, vector<16x8xf32> -> vector<16x8xf32>
    %c0_21 = arith.constant 0 : index
    %c0_22 = arith.constant 0 : index
    %24 = vector.load %arg9[%c0_21, %c0_22] : memref<1x8xf32, #tpu.memory_space<vmem>>, vector<1x8xf32>
    %25 = vector.broadcast %24 : vector<1x8xf32> to vector<16x8xf32>
    %26 = arith.addf %23, %25 : vector<16x8xf32>
    %c0_23 = arith.constant 0 : index
    %c0_24 = arith.constant 0 : index
    %27 = vector.load %arg10[%c0_23, %c0_24] : memref<16x8xf32, #tpu.memory_space<vmem>>, vector<16x8xf32>
    tpu.vector_store %arg10[%c0_23, %c0_24], %26 {strides = array<i32>} : memref<16x8xf32, #tpu.memory_space<vmem>>, vector<16x8xf32>,
    return
  }
  func.func @transform_0(%arg0: i32) -> (i32, i32) {
    %c0_i32 = arith.constant 0 : i32
    %c0_i32_0 = arith.constant 0 : i32
    return %arg0, %c0_i32 : i32, i32
  }
  func.func @transform_1(%arg0: i32) -> (i32, i32) {
    %c0_i32 = arith.constant 0 : i32
    %c0_i32_0 = arith.constant 0 : i32
    %c0_i32_1 = arith.constant 0 : i32
    return %c0_i32, %c0_i32_0 : i32, i32
  }
  func.func @transform_2(%arg0: i32) -> (i32, i32) {
    %c0_i32 = arith.constant 0 : i32
    %c0_i32_0 = arith.constant 0 : i32
    %c0_i32_1 = arith.constant 0 : i32
    return %c0_i32, %c0_i32_0 : i32, i32
  }
  func.func @transform_3(%arg0: i32) -> (i32, i32) {
    %c0_i32 = arith.constant 0 : i32
    %c0_i32_0 = arith.constant 0 : i32
    %c0_i32_1 = arith.constant 0 : i32
    return %c0_i32, %c0_i32_0 : i32, i32
  }
  func.func @transform_4(%arg0: i32) -> (i32, i32) {
    %c0_i32 = arith.constant 0 : i32
    %c0_i32_0 = arith.constant 0 : i32
    %c0_i32_1 = arith.constant 0 : i32
    return %c0_i32, %c0_i32_0 : i32, i32
  }
  func.func @transform_5(%arg0: i32) -> (i32, i32) {
    %c0_i32 = arith.constant 0 : i32
    %c0_i32_0 = arith.constant 0 : i32
    %c0_i32_1 = arith.constant 0 : i32
    return %c0_i32, %c0_i32_0 : i32, i32
  }
  func.func @transform_6(%arg0: i32) -> (i32, i32) {
    %c0_i32 = arith.constant 0 : i32
    %c0_i32_0 = arith.constant 0 : i32
    %c0_i32_1 = arith.constant 0 : i32
    return %c0_i32, %c0_i32_0 : i32, i32
  }
  func.func @transform_7(%arg0: i32) -> (i32, i32) {
    %c0_i32 = arith.constant 0 : i32
    %c0_i32_0 = arith.constant 0 : i32
    %c0_i32_1 = arith.constant 0 : i32
    return %c0_i32, %c0_i32_0 : i32, i32
  }
  func.func @transform_8(%arg0: i32) -> (i32, i32) {
    %c0_i32 = arith.constant 0 : i32
    %c0_i32_0 = arith.constant 0 : i32
    %c0_i32_1 = arith.constant 0 : i32
    return %c0_i32, %c0_i32_0 : i32, i32
  }
  func.func @transform_9(%arg0: i32) -> (i32, i32) {
    %c0_i32 = arith.constant 0 : i32
    %c0_i32_0 = arith.constant 0 : i32
    return %arg0, %c0_i32 : i32, i32
  }
}

</mosaic_0001>

<llo_original>
// kernel: dqn_forward.1
$region0: #{dqn_forward.1}
  #allocation0 [shape = 'u32[]', space=smem, size = 0x4, offset = 0x4, fixed_abs, tag = 'smem constant byte address 0x4 - core index']
  #allocation1 [shape = 'u32[144,128]{1,0:T(1,128)}', space=vmem, size = 0x12000, scoped, tag = 'internal scratch']
  %s0 = inlined_call_operand.vmem [shape: f32[16,32], index: 0, kind: input, shape index: {}]
  %s1 = inlined_call_operand.vmem [shape: f32[32,128], index: 1, kind: input, shape index: {}]
  %s2 = inlined_call_operand.vmem [shape: f32[1,128], index: 2, kind: input, shape index: {}]
  %s3 = inlined_call_operand.hbm [shape: f32[128,256], index: 3, kind: input, shape index: {}]
  %s4 = inlined_call_operand.vmem [shape: f32[1,256], index: 4, kind: input, shape index: {}]
  %s5 = inlined_call_operand.hbm [shape: f32[256,128], index: 5, kind: input, shape index: {}]
  %s6 = inlined_call_operand.vmem [shape: f32[1,128], index: 6, kind: input, shape index: {}]
  %s7 = inlined_call_operand.vmem [shape: f32[128,8], index: 7, kind: input, shape index: {}]
  %s8 = inlined_call_operand.vmem [shape: f32[1,8], index: 8, kind: input, shape index: {}]
  %s9 = inlined_call_operand.vmem [shape: f32[16,8], index: 9, kind: output, shape index: {}]
  %s10 = sld [smem:[#allocation0]]
  $region54: #{dqn_forward.1} parent=0
    _
  %s12 = ssub.s32 1, %s10
  %s13 = scalar_select 0, %s12, %s10
  $region1: #{dqn_forward.1} parent=0
    #allocation2 [shape = 'u8[131072]{0}', space=vmem, size = 0x20000, scoped, tag = 'input window, operand 3, single buffered']
    #allocation3 [shape = 's32[1]{0}', space=sflag, size = 0x4, scoped, tag = 'scoped memory for dqn_forward.1']
    #allocation4 [shape = 'u8[131072]{0}', space=vmem, size = 0x20000, scoped, tag = 'input window, operand 5, single buffered']
    #allocation5 [shape = 's32[1]{0}', space=sflag, size = 0x4, scoped, tag = 'scoped memory for dqn_forward.1']
    %14 = vsyncpa [#allocation3], 0
    %15 = vsyncpa [#allocation5], 0
    // Predicated region
    $region2: #{dqn_forward.1} parent=1 // pred_check
      _
    $region3: #{dqn_forward.1} parent=1 // pred_check_branch
      %17 = sbr.rel (0) target = $region5
    $region4: #{dqn_forward.1} parent=1 // pred_region
      _
    $region5: #{dqn_forward.1} parent=1 // pred_fallthru
      _
    // Predicated region
    $region6: #{dqn_forward.1} parent=1 // pred_check
      _
    $region7: #{dqn_forward.1} parent=1 // pred_check_branch
      %19 = sbr.rel (0) target = $region9
    $region8: #{dqn_forward.1} parent=1 // pred_region
      _
    $region9: #{dqn_forward.1} parent=1 // pred_fallthru
      _
    // Predicated region
    $region10: #{dqn_forward.1} parent=1 // pred_check
      _
    $region11: #{dqn_forward.1} parent=1 // pred_check_branch
      %21 = sbr.rel (0) target = $region13
    $region12: #{dqn_forward.1} parent=1 // pred_region
      _
    $region13: #{dqn_forward.1} parent=1 // pred_fallthru
      _
    // Predicated region
    $region14: #{dqn_forward.1} parent=1 // pred_check
      _
    $region15: #{dqn_forward.1} parent=1 // pred_check_branch
      %23 = sbr.rel (0) target = $region17
    $region16: #{dqn_forward.1} parent=1 // pred_region
      %s25 = ssub.s32 4096, 4096
      %26 = vsyncadd [#allocation3], %s25
      %s27 = sshll.u32 [#allocation2], 4
      %s28 = int_to_ptr.vmem [resolvable:$true] %s27
      %33 = dma.hbm_to_vmem [thread:$0]  %s3, 4096, %s28, [#allocation3], 256, 256, 16
    $region17: #{dqn_forward.1} parent=1 // pred_fallthru
      _
    // Predicated region
    $region18: #{dqn_forward.1} parent=1 // pred_check
      _
    $region19: #{dqn_forward.1} parent=1 // pred_check_branch
      %35 = sbr.rel (0) target = $region21
    $region20: #{dqn_forward.1} parent=1 // pred_region
      _
    $region21: #{dqn_forward.1} parent=1 // pred_fallthru
      _
    // Predicated region
    $region22: #{dqn_forward.1} parent=1 // pred_check
      _
    $region23: #{dqn_forward.1} parent=1 // pred_check_branch
      %37 = sbr.rel (0) target = $region25
    $region24: #{dqn_forward.1} parent=1 // pred_region
      %s39 = ssub.s32 4096, 4096
      %40 = vsyncadd [#allocation5], %s39
      %s41 = sshll.u32 [#allocation4], 4
      %s42 = int_to_ptr.vmem [resolvable:$true] %s41
      %47 = dma.hbm_to_vmem [thread:$0]  %s5, 4096, %s42, [#allocation5], 128, 128, 8
    $region25: #{dqn_forward.1} parent=1 // pred_fallthru
      _
    // Predicated region
    $region26: #{dqn_forward.1} parent=1 // pred_check
      _
    $region27: #{dqn_forward.1} parent=1 // pred_check_branch
      %49 = sbr.rel (0) target = $region29
    $region28: #{dqn_forward.1} parent=1 // pred_region
      _
    $region29: #{dqn_forward.1} parent=1 // pred_fallthru
      _
    // Predicated region
    $region30: #{dqn_forward.1} parent=1 // pred_check
      _
    $region31: #{dqn_forward.1} parent=1 // pred_check_branch
      %51 = sbr.rel (0) target = $region33
    $region32: #{dqn_forward.1} parent=1 // pred_region
      _
    $region33: #{dqn_forward.1} parent=1 // pred_fallthru
      _
    // Predicated region
    $region34: #{dqn_forward.1} parent=1 // pred_check
      _
    $region35: #{dqn_forward.1} parent=1 // pred_check_branch
      %53 = sbr.rel (0) target = $region37
    $region36: #{dqn_forward.1} parent=1 // pred_region
      _
    $region37: #{dqn_forward.1} parent=1 // pred_fallthru
      _
    // Predicated region
    $region38: #{dqn_forward.1} parent=1 // pred_check
      _
    $region39: #{dqn_forward.1} parent=1 // pred_check_branch
      %55 = sbr.rel (0) target = $region41
    $region40: #{dqn_forward.1} parent=1 // pred_region
      %56 = dma.done [#allocation3], 4096
    $region41: #{dqn_forward.1} parent=1 // pred_fallthru
      _
    // Predicated region
    $region42: #{dqn_forward.1} parent=1 // pred_check
      _
    $region43: #{dqn_forward.1} parent=1 // pred_check_branch
      %58 = sbr.rel (0) target = $region45
    $region44: #{dqn_forward.1} parent=1 // pred_region
      %59 = dma.done [#allocation5], 4096
    $region45: #{dqn_forward.1} parent=1 // pred_fallthru
      _
    %v60 = vld [vmem:[%s0] sm:$0xff]
    %v61 = vld [vmem:[%s0 + $0x8] sm:$0xff]
    %v62 = vld [vmem:[%s1] sm:$0xff]
    %v63 = vld [vmem:[%s1 + $0x8] sm:$0xff]
    %v64 = vld [vmem:[%s1 + $0x10] sm:$0xff]
    %v65 = vld [vmem:[%s1 + $0x18] sm:$0xff]
    %v66 = vld [vmem:[%s2] sm:$0x1]
    %v68 = vlaneseq
    %v69 = vshrl.u32 %v68, 7
    %v70 = vsub.s32 0, %v69
    %v71 = vrot.slane %v66, %v70
    %vm73 = vcmask 261120
    %v75 = vsel %vm73, %v60, 0
    %v78 = vsel %vm73, %v61, 0
    %80 = vmatprep.subr.mxu0 0.0
    %81 = vmatpush1.msra.mxu0 0.0
    %82 = vmatprep.subr.mxu0 0.0
    %83 = vmatpush1.msra.mxu0 0.0
    %84 = vmatprep.subr.mxu0 0.0
    %85 = vmatpush1.msra.mxu0 0.0
    %86 = vmatprep.subr.mxu0 0.0
    %87 = vmatpush1.msra.mxu0 0.0
    %88 = vmatprep.subr.mxu0 0.0
    %89 = vmatpush1.msra.mxu0 0.0
    %90 = vmatprep.subr.mxu0 0.0
    %91 = vmatpush1.msra.mxu0 0.0
    %92 = vmatprep.subr.mxu0 0.0
    %93 = vmatpush1.msra.mxu0 0.0
    %94 = vmatprep.subr.mxu0 0.0
    %95 = vmatpush1.msra.mxu0 0.0
    %96 = vmatprep.subr.mxu0 0.0
    %97 = vmatpush1.msra.mxu0 0.0
    %98 = vmatprep.subr.mxu0 0.0
    %99 = vmatpush1.msra.mxu0 0.0
    %100 = vmatprep.subr.mxu0 0.0
    %101 = vmatpush1.msra.mxu0 0.0
    %102 = vmatprep.subr.mxu0 0.0
    %103 = vmatpush1.msra.mxu0 0.0
    %104 = vmatprep.subr.mxu0 0.0
    %105 = vmatpush1.msra.mxu0 %v65
    %106 = vmatprep.subr.mxu0 0.0
    %107 = vmatpush1.msra.mxu0 %v64
    %108 = vmatprep.subr.mxu0 0.0
    %109 = vmatpush1.msra.mxu0 %v63
    %110 = vmatprep.subr.mxu0 0.0
    %111 = vmatpush1.msra.mxu0 %v62
    %112 = vmatprep.subr.mxu0 0.0
    %113 = vmatpush2.msra.mxu0 0.0
    %114 = vmatprep.subr.mxu0 0.0
    %115 = vmatpush2.msra.mxu0 0.0
    %116 = vmatprep.subr.mxu0 0.0
    %117 = vmatpush2.msra.mxu0 0.0
    %118 = vmatprep.subr.mxu0 0.0
    %119 = vmatpush2.msra.mxu0 0.0
    %120 = vmatprep.subr.mxu0 0.0
    %121 = vmatpush2.msra.mxu0 0.0
    %122 = vmatprep.subr.mxu0 0.0
    %123 = vmatpush2.msra.mxu0 0.0
    %124 = vmatprep.subr.mxu0 0.0
    %125 = vmatpush2.msra.mxu0 0.0
    %126 = vmatprep.subr.mxu0 0.0
    %127 = vmatpush2.msra.mxu0 0.0
    %128 = vmatprep.subr.mxu0 0.0
    %129 = vmatpush2.msra.mxu0 0.0
    %130 = vmatprep.subr.mxu0 0.0
    %131 = vmatpush2.msra.mxu0 0.0
    %132 = vmatprep.subr.mxu0 0.0
    %133 = vmatpush2.msra.mxu0 0.0
    %134 = vmatprep.subr.mxu0 0.0
    %135 = vmatpush2.msra.mxu0 0.0
    %136 = vmatprep.subr.mxu0 0.0
    %137 = vmatpush2.msra.mxu0 0.0
    %138 = vmatprep.subr.mxu0 0.0
    %139 = vmatpush2.msra.mxu0 0.0
    %140 = vmatprep.subr.mxu0 0.0
    %141 = vmatpush2.msra.mxu0 0.0
    %142 = vmatprep.subr.mxu0 0.0
    %143 = vmatpush2.msra.mxu0 0.0
    %144 = vmatprep.mubr.f32.mxu0 0.0
    %145 = vmatmul.mubr.f32.gmra.mxu0 %v75
    %v146 = vpop.f32.mrf.mxu0
    %v147 = vadd.f32 %v71, %v146
    %v148 = vpop.f32.mrf.mxu0
    %149 = vmatprep.mubr.f32.mxu0 0.0
    %150 = vmatmul.mubr.f32.gmra.mxu0 %v78
    %v151 = vpop.f32.mrf.mxu0
    %v152 = vadd.f32 %v71, %v151
    %v153 = vpop.f32.mrf.mxu0
    %154 = vdwg.mxu0
    %v155 = vmax.f32 %v147, 0.0
    %v156 = vmax.f32 %v152, 0.0
    %v157 = vld [vmem:[#allocation2] sm:$0xff]
    %v158 = vld [vmem:[#allocation2 + $0x8] sm:$0xff]
    %v159 = vld [vmem:[#allocation2 + $0x10] sm:$0xff]
    %v160 = vld [vmem:[#allocation2 + $0x18] sm:$0xff]
    %v161 = vld [vmem:[#allocation2 + $0x20] sm:$0xff]
    %v162 = vld [vmem:[#allocation2 + $0x28] sm:$0xff]
    %v163 = vld [vmem:[#allocation2 + $0x30] sm:$0xff]
    %v164 = vld [vmem:[#allocation2 + $0x38] sm:$0xff]
    %v165 = vld [vmem:[#allocation2 + $0x40] sm:$0xff]
    %v166 = vld [vmem:[#allocation2 + $0x48] sm:$0xff]
    %v167 = vld [vmem:[#allocation2 + $0x50] sm:$0xff]
    %v168 = vld [vmem:[#allocation2 + $0x58] sm:$0xff]
    %v169 = vld [vmem:[#allocation2 + $0x60] sm:$0xff]
    %v170 = vld [vmem:[#allocation2 + $0x68] sm:$0xff]
    %v171 = vld [vmem:[#allocation2 + $0x70] sm:$0xff]
    %v172 = vld [vmem:[#allocation2 + $0x78] sm:$0xff]
    %v173 = vld [vmem:[#allocation2 + $0x80] sm:$0xff]
    %v174 = vld [vmem:[#allocation2 + $0x88] sm:$0xff]
    %v175 = vld [vmem:[#allocation2 + $0x90] sm:$0xff]
    %v176 = vld [vmem:[#allocation2 + $0x98] sm:$0xff]
    %v177 = vld [vmem:[#allocation2 + $0xa0] sm:$0xff]
    %v178 = vld [vmem:[#allocation2 + $0xa8] sm:$0xff]
    %v179 = vld [vmem:[#allocation2 + $0xb0] sm:$0xff]
    %v180 = vld [vmem:[#allocation2 + $0xb8] sm:$0xff]
    %v181 = vld [vmem:[#allocation2 + $0xc0] sm:$0xff]
    %v182 = vld [vmem:[#allocation2 + $0xc8] sm:$0xff]
    %v183 = vld [vmem:[#allocation2 + $0xd0] sm:$0xff]
    %v184 = vld [vmem:[#allocation2 + $0xd8] sm:$0xff]
    %v185 = vld [vmem:[#allocation2 + $0xe0] sm:$0xff]
    %v186 = vld [vmem:[#allocation2 + $0xe8] sm:$0xff]
    %v187 = vld [vmem:[#allocation2 + $0xf0] sm:$0xff]
    %v188 = vld [vmem:[#allocation2 + $0xf8] sm:$0xff]
    %v189 = vld [vmem:[%s4] sm:$0x3]
    %v191 = vlaneseq
    %v192 = vshrl.u32 %v191, 7
    %v193 = vsub.s32 0, %v192
    %v194 = vrot.slane %v189, %v193
    %v195 = vlaneseq
    %v196 = vshrl.u32 %v195, 7
    %v197 = vsub.s32 1, %v196
    %v198 = vrot.slane %v189, %v197
    %201 = vmatprep.subr.mxu0 %v188
    %202 = vmatpush1.msra.mxu0 %v187
    %203 = vmatprep.subr.mxu0 %v186
    %204 = vmatpush1.msra.mxu0 %v185
    %205 = vmatprep.subr.mxu0 %v184
    %206 = vmatpush1.msra.mxu0 %v183
    %207 = vmatprep.subr.mxu0 %v182
    %208 = vmatpush1.msra.mxu0 %v181
    %209 = vmatprep.subr.mxu0 %v180
    %210 = vmatpush1.msra.mxu0 %v179
    %211 = vmatprep.subr.mxu0 %v178
    %212 = vmatpush1.msra.mxu0 %v177
    %213 = vmatprep.subr.mxu0 %v176
    %214 = vmatpush1.msra.mxu0 %v175
    %215 = vmatprep.subr.mxu0 %v174
    %216 = vmatpush1.msra.mxu0 %v173
    %217 = vmatprep.subr.mxu0 %v172
    %218 = vmatpush1.msra.mxu0 %v171
    %219 = vmatprep.subr.mxu0 %v170
    %220 = vmatpush1.msra.mxu0 %v169
    %221 = vmatprep.subr.mxu0 %v168
    %222 = vmatpush1.msra.mxu0 %v167
    %223 = vmatprep.subr.mxu0 %v166
    %224 = vmatpush1.msra.mxu0 %v165
    %225 = vmatprep.subr.mxu0 %v164
    %226 = vmatpush1.msra.mxu0 %v163
    %227 = vmatprep.subr.mxu0 %v162
    %228 = vmatpush1.msra.mxu0 %v161
    %229 = vmatprep.subr.mxu0 %v160
    %230 = vmatpush1.msra.mxu0 %v159
    %231 = vmatprep.subr.mxu0 %v158
    %232 = vmatpush1.msra.mxu0 %v157
    %233 = vmatprep.subr.mxu0 0.0
    %234 = vmatpush2.msra.mxu0 0.0
    %235 = vmatprep.subr.mxu0 0.0
    %236 = vmatpush2.msra.mxu0 0.0
    %237 = vmatprep.subr.mxu0 0.0
    %238 = vmatpush2.msra.mxu0 0.0
    %239 = vmatprep.subr.mxu0 0.0
    %240 = vmatpush2.msra.mxu0 0.0
    %241 = vmatprep.subr.mxu0 0.0
    %242 = vmatpush2.msra.mxu0 0.0
    %243 = vmatprep.subr.mxu0 0.0
    %244 = vmatpush2.msra.mxu0 0.0
    %245 = vmatprep.subr.mxu0 0.0
    %246 = vmatpush2.msra.mxu0 0.0
    %247 = vmatprep.subr.mxu0 0.0
    %248 = vmatpush2.msra.mxu0 0.0
    %249 = vmatprep.subr.mxu0 0.0
    %250 = vmatpush2.msra.mxu0 0.0
    %251 = vmatprep.subr.mxu0 0.0
    %252 = vmatpush2.msra.mxu0 0.0
    %253 = vmatprep.subr.mxu0 0.0
    %254 = vmatpush2.msra.mxu0 0.0
    %255 = vmatprep.subr.mxu0 0.0
    %256 = vmatpush2.msra.mxu0 0.0
    %257 = vmatprep.subr.mxu0 0.0
    %258 = vmatpush2.msra.mxu0 0.0
    %259 = vmatprep.subr.mxu0 0.0
    %260 = vmatpush2.msra.mxu0 0.0
    %261 = vmatprep.subr.mxu0 0.0
    %262 = vmatpush2.msra.mxu0 0.0
    %263 = vmatprep.subr.mxu0 0.0
    %264 = vmatpush2.msra.mxu0 0.0
    %265 = vmatprep.mubr.f32.mxu0 0.0
    %266 = vmatmul.mubr.f32.gmra.mxu0 %v155
    %v267 = vpop.f32.mrf.mxu0
    %v268 = vadd.f32 %v194, %v267
    %v269 = vpop.f32.mrf.mxu0
    %v270 = vadd.f32 %v198, %v269
    %271 = vmatprep.mubr.f32.mxu0 0.0
    %272 = vmatmul.mubr.f32.gmra.mxu0 %v156
    %v273 = vpop.f32.mrf.mxu0
    %v274 = vadd.f32 %v194, %v273
    %v275 = vpop.f32.mrf.mxu0
    %v276 = vadd.f32 %v198, %v275
    %277 = vdwg.mxu0
    %v278 = vmax.f32 %v268, 0.0
    %v279 = vmax.f32 %v270, 0.0
    %v280 = vmax.f32 %v274, 0.0
    %v281 = vmax.f32 %v276, 0.0
    %v282 = vld [vmem:[#allocation4] sm:$0xff]
    %v283 = vld [vmem:[#allocation4 + $0x8] sm:$0xff]
    %v284 = vld [vmem:[#allocation4 + $0x10] sm:$0xff]
    %v285 = vld [vmem:[#allocation4 + $0x18] sm:$0xff]
    %v286 = vld [vmem:[#allocation4 + $0x20] sm:$0xff]
    %v287 = vld [vmem:[#allocation4 + $0x28] sm:$0xff]
    %v288 = vld [vmem:[#allocation4 + $0x30] sm:$0xff]
    %v289 = vld [vmem:[#allocation4 + $0x38] sm:$0xff]
    %v290 = vld [vmem:[#allocation4 + $0x40] sm:$0xff]
    %v291 = vld [vmem:[#allocation4 + $0x48] sm:$0xff]
    %v292 = vld [vmem:[#allocation4 + $0x50] sm:$0xff]
    %v293 = vld [vmem:[#allocation4 + $0x58] sm:$0xff]
    %v294 = vld [vmem:[#allocation4 + $0x60] sm:$0xff]
    %v295 = vld [vmem:[#allocation4 + $0x68] sm:$0xff]
    %v296 = vld [vmem:[#allocation4 + $0x70] sm:$0xff]
    %v297 = vld [vmem:[#allocation4 + $0x78] sm:$0xff]
    %v298 = vld [vmem:[#allocation4 + $0x80] sm:$0xff]
    %v299 = vld [vmem:[#allocation4 + $0x88] sm:$0xff]
    %v300 = vld [vmem:[#allocation4 + $0x90] sm:$0xff]
    %v301 = vld [vmem:[#allocation4 + $0x98] sm:$0xff]
    %v302 = vld [vmem:[#allocation4 + $0xa0] sm:$0xff]
    %v303 = vld [vmem:[#allocation4 + $0xa8] sm:$0xff]
    %v304 = vld [vmem:[#allocation4 + $0xb0] sm:$0xff]
    %v305 = vld [vmem:[#allocation4 + $0xb8] sm:$0xff]
    %v306 = vld [vmem:[#allocation4 + $0xc0] sm:$0xff]
    %v307 = vld [vmem:[#allocation4 + $0xc8] sm:$0xff]
    %v308 = vld [vmem:[#allocation4 + $0xd0] sm:$0xff]
    %v309 = vld [vmem:[#allocation4 + $0xd8] sm:$0xff]
    %v310 = vld [vmem:[#allocation4 + $0xe0] sm:$0xff]
    %v311 = vld [vmem:[#allocation4 + $0xe8] sm:$0xff]
    %v312 = vld [vmem:[#allocation4 + $0xf0] sm:$0xff]
    %v313 = vld [vmem:[#allocation4 + $0xf8] sm:$0xff]
    %v314 = vld [vmem:[%s6] sm:$0x1]
    %v316 = vlaneseq
    %v317 = vshrl.u32 %v316, 7
    %v318 = vsub.s32 0, %v317
    %v319 = vrot.slane %v314, %v318
    %321 = vmatprep.subr.mxu0 0.0
    %322 = vmatpush1.msra.mxu0 %v297
    %323 = vmatprep.subr.mxu0 0.0
    %324 = vmatpush1.msra.mxu0 %v296
    %325 = vmatprep.subr.mxu0 0.0
    %326 = vmatpush1.msra.mxu0 %v295
    %327 = vmatprep.subr.mxu0 0.0
    %328 = vmatpush1.msra.mxu0 %v294
    %329 = vmatprep.subr.mxu0 0.0
    %330 = vmatpush1.msra.mxu0 %v293
    %331 = vmatprep.subr.mxu0 0.0
    %332 = vmatpush1.msra.mxu0 %v292
    %333 = vmatprep.subr.mxu0 0.0
    %334 = vmatpush1.msra.mxu0 %v291
    %335 = vmatprep.subr.mxu0 0.0
    %336 = vmatpush1.msra.mxu0 %v290
    %337 = vmatprep.subr.mxu0 0.0
    %338 = vmatpush1.msra.mxu0 %v289
    %339 = vmatprep.subr.mxu0 0.0
    %340 = vmatpush1.msra.mxu0 %v288
    %341 = vmatprep.subr.mxu0 0.0
    %342 = vmatpush1.msra.mxu0 %v287
    %343 = vmatprep.subr.mxu0 0.0
    %344 = vmatpush1.msra.mxu0 %v286
    %345 = vmatprep.subr.mxu0 0.0
    %346 = vmatpush1.msra.mxu0 %v285
    %347 = vmatprep.subr.mxu0 0.0
    %348 = vmatpush1.msra.mxu0 %v284
    %349 = vmatprep.subr.mxu0 0.0
    %350 = vmatpush1.msra.mxu0 %v283
    %351 = vmatprep.subr.mxu0 0.0
    %352 = vmatpush1.msra.mxu0 %v282
    %353 = vmatprep.subr.mxu0 0.0
    %354 = vmatpush2.msra.mxu0 %v313
    %355 = vmatprep.subr.mxu0 0.0
    %356 = vmatpush2.msra.mxu0 %v312
    %357 = vmatprep.subr.mxu0 0.0
    %358 = vmatpush2.msra.mxu0 %v311
    %359 = vmatprep.subr.mxu0 0.0
    %360 = vmatpush2.msra.mxu0 %v310
    %361 = vmatprep.subr.mxu0 0.0
    %362 = vmatpush2.msra.mxu0 %v309
    %363 = vmatprep.subr.mxu0 0.0
    %364 = vmatpush2.msra.mxu0 %v308
    %365 = vmatprep.subr.mxu0 0.0
    %366 = vmatpush2.msra.mxu0 %v307
    %367 = vmatprep.subr.mxu0 0.0
    %368 = vmatpush2.msra.mxu0 %v306
    %369 = vmatprep.subr.mxu0 0.0
    %370 = vmatpush2.msra.mxu0 %v305
    %371 = vmatprep.subr.mxu0 0.0
    %372 = vmatpush2.msra.mxu0 %v304
    %373 = vmatprep.subr.mxu0 0.0
    %374 = vmatpush2.msra.mxu0 %v303
    %375 = vmatprep.subr.mxu0 0.0
    %376 = vmatpush2.msra.mxu0 %v302
    %377 = vmatprep.subr.mxu0 0.0
    %378 = vmatpush2.msra.mxu0 %v301
    %379 = vmatprep.subr.mxu0 0.0
    %380 = vmatpush2.msra.mxu0 %v300
    %381 = vmatprep.subr.mxu0 0.0
    %382 = vmatpush2.msra.mxu0 %v299
    %383 = vmatprep.subr.mxu0 0.0
    %384 = vmatpush2.msra.mxu0 %v298
    %385 = vmatprep.mubr.f32.mxu0 %v279
    %386 = vmatmul.mubr.f32.gmra.mxu0 %v278
    %v387 = vpop.f32.mrf.mxu0
    %v388 = vadd.f32 %v319, %v387
    %v389 = vpop.f32.mrf.mxu0
    %390 = vmatprep.mubr.f32.mxu0 %v281
    %391 = vmatmul.mubr.f32.gmra.mxu0 %v280
    %v392 = vpop.f32.mrf.mxu0
    %v393 = vadd.f32 %v319, %v392
    %v394 = vpop.f32.mrf.mxu0
    %395 = vdwg.mxu0
    %v396 = vmax.f32 %v388, 0.0
    %v397 = vmax.f32 %v393, 0.0
    %v398 = vld [vmem:[%s7] sm:$0xff]
    %v399 = vld [vmem:[%s7 + $0x8] sm:$0xff]
    %v400 = vld [vmem:[%s7 + $0x10] sm:$0xff]
    %v401 = vld [vmem:[%s7 + $0x18] sm:$0xff]
    %v402 = vld [vmem:[%s7 + $0x20] sm:$0xff]
    %v403 = vld [vmem:[%s7 + $0x28] sm:$0xff]
    %v404 = vld [vmem:[%s7 + $0x30] sm:$0xff]
    %v405 = vld [vmem:[%s7 + $0x38] sm:$0xff]
    %v406 = vld [vmem:[%s7 + $0x40] sm:$0xff]
    %v407 = vld [vmem:[%s7 + $0x48] sm:$0xff]
    %v408 = vld [vmem:[%s7 + $0x50] sm:$0xff]
    %v409 = vld [vmem:[%s7 + $0x58] sm:$0xff]
    %v410 = vld [vmem:[%s7 + $0x60] sm:$0xff]
    %v411 = vld [vmem:[%s7 + $0x68] sm:$0xff]
    %v412 = vld [vmem:[%s7 + $0x70] sm:$0xff]
    %v413 = vld [vmem:[%s7 + $0x78] sm:$0xff]
    %v414 = vld [vmem:[%s8] sm:$0x1]
    %v416 = vlaneseq
    %v417 = vshrl.u32 %v416, 7
    %v418 = vsub.s32 0, %v417
    %v419 = vrot.slane %v414, %v418
    %421 = vmatprep.subr.mxu0 0.0
    %422 = vmatpush1.msra.mxu0 %v413
    %423 = vmatprep.subr.mxu0 0.0
    %424 = vmatpush1.msra.mxu0 %v412
    %425 = vmatprep.subr.mxu0 0.0
    %426 = vmatpush1.msra.mxu0 %v411
    %427 = vmatprep.subr.mxu0 0.0
    %428 = vmatpush1.msra.mxu0 %v410
    %429 = vmatprep.subr.mxu0 0.0
    %430 = vmatpush1.msra.mxu0 %v409
    %431 = vmatprep.subr.mxu0 0.0
    %432 = vmatpush1.msra.mxu0 %v408
    %433 = vmatprep.subr.mxu0 0.0
    %434 = vmatpush1.msra.mxu0 %v407
    %435 = vmatprep.subr.mxu0 0.0
    %436 = vmatpush1.msra.mxu0 %v406
    %437 = vmatprep.subr.mxu0 0.0
    %438 = vmatpush1.msra.mxu0 %v405
    %439 = vmatprep.subr.mxu0 0.0
    %440 = vmatpush1.msra.mxu0 %v404
    %441 = vmatprep.subr.mxu0 0.0
    %442 = vmatpush1.msra.mxu0 %v403
    %443 = vmatprep.subr.mxu0 0.0
    %444 = vmatpush1.msra.mxu0 %v402
    %445 = vmatprep.subr.mxu0 0.0
    %446 = vmatpush1.msra.mxu0 %v401
    %447 = vmatprep.subr.mxu0 0.0
    %448 = vmatpush1.msra.mxu0 %v400
    %449 = vmatprep.subr.mxu0 0.0
    %450 = vmatpush1.msra.mxu0 %v399
    %451 = vmatprep.subr.mxu0 0.0
    %452 = vmatpush1.msra.mxu0 %v398
    %453 = vmatprep.subr.mxu0 0.0
    %454 = vmatpush2.msra.mxu0 0.0
    %455 = vmatprep.subr.mxu0 0.0
    %456 = vmatpush2.msra.mxu0 0.0
    %457 = vmatprep.subr.mxu0 0.0
    %458 = vmatpush2.msra.mxu0 0.0
    %459 = vmatprep.subr.mxu0 0.0
    %460 = vmatpush2.msra.mxu0 0.0
    %461 = vmatprep.subr.mxu0 0.0
    %462 = vmatpush2.msra.mxu0 0.0
    %463 = vmatprep.subr.mxu0 0.0
    %464 = vmatpush2.msra.mxu0 0.0
    %465 = vmatprep.subr.mxu0 0.0
    %466 = vmatpush2.msra.mxu0 0.0
    %467 = vmatprep.subr.mxu0 0.0
    %468 = vmatpush2.msra.mxu0 0.0
    %469 = vmatprep.subr.mxu0 0.0
    %470 = vmatpush2.msra.mxu0 0.0
    %471 = vmatprep.subr.mxu0 0.0
    %472 = vmatpush2.msra.mxu0 0.0
    %473 = vmatprep.subr.mxu0 0.0
    %474 = vmatpush2.msra.mxu0 0.0
    %475 = vmatprep.subr.mxu0 0.0
    %476 = vmatpush2.msra.mxu0 0.0
    %477 = vmatprep.subr.mxu0 0.0
    %478 = vmatpush2.msra.mxu0 0.0
    %479 = vmatprep.subr.mxu0 0.0
    %480 = vmatpush2.msra.mxu0 0.0
    %481 = vmatprep.subr.mxu0 0.0
    %482 = vmatpush2.msra.mxu0 0.0
    %483 = vmatprep.subr.mxu0 0.0
    %484 = vmatpush2.msra.mxu0 0.0
    %485 = vmatprep.mubr.f32.mxu0 0.0
    %486 = vmatmul.mubr.f32.gmra.mxu0 %v396
    %v487 = vpop.f32.mrf.mxu0
    %v488 = vadd.f32 %v419, %v487
    %v489 = vpop.f32.mrf.mxu0
    %490 = vmatprep.mubr.f32.mxu0 0.0
    %491 = vmatmul.mubr.f32.gmra.mxu0 %v397
    %v492 = vpop.f32.mrf.mxu0
    %v493 = vadd.f32 %v419, %v492
    %v494 = vpop.f32.mrf.mxu0
    %495 = vdwg.mxu0
    %vm496 = vcmask 64512
    %497 = vst.msk [vmem:[%s9] sm:$0xff] %vm496, %v488
    %498 = vst.msk [vmem:[%s9 + $0x8] sm:$0xff] %vm496, %v493
    // Predicated region
    $region46: #{dqn_forward.1} parent=1 // pred_check
      _
    $region47: #{dqn_forward.1} parent=1 // pred_check_branch
      %500 = sbr.rel (0) target = $region49
    $region48: #{dqn_forward.1} parent=1 // pred_region
      _
    $region49: #{dqn_forward.1} parent=1 // pred_fallthru
      _
    // Predicated region
    $region50: #{dqn_forward.1} parent=1 // pred_check
      _
    $region51: #{dqn_forward.1} parent=1 // pred_check_branch
      %502 = sbr.rel (0) target = $region53
    $region52: #{dqn_forward.1} parent=1 // pred_region
      _
    $region53: #{dqn_forward.1} parent=1 // pred_fallthru
      _
    %503 = vsyncpa [#allocation3], 1
    %504 = vsyncpa [#allocation5], 1

</llo_original>
